<compile_context>
chip_gen: v7x
topology: tpu7x:2x2x1
jax: 0.10.0
libtpu: 0.0.40
codegen_flags: <defaults>
</compile_context>

<pallas_src>
import functools

import jax
import jax.numpy as jnp
from jax import lax
from jax.experimental import pallas as pl
from jax.experimental.pallas import tpu as pltpu

LANES = 128
MAX_ROW_TILE = 8192          # rows per grid step (review: 4096-8192)
MAX_CHUNK = 512              # rows per inner fori_loop step (bounds intermediates)
MIN_PALLAS_ELEMENTS = 1 << 18  # below this, plain XLA beats a pallas launch


def _num_tensorcores() -> int:
    """TensorCores a single pallas_call can span on this chip (1 on v5e/v6e)."""
    # TODO(synk): on v7x, pltpu.CORE_PARALLEL / pl.core_map would *guarantee* the
    # 2-TC split; here we keep the safe "parallel" leading grid axis.
    try:
        kind = jax.devices()[0].device_kind.lower()
    except Exception:
        return 1
    return 2 if ("v7" in kind or "v4" in kind) else 1


def _mse_sum_kernel(o_ref, t_ref, out_ref, *, row_tile, chunk, rows,
                    steps_per_core, num_cores, edge_block, needs_mask, unroll):
    """Accumulate sum((o - t)^2) of this core's row blocks into out_ref (8,128)."""
    if num_cores > 1:
        c = pl.program_id(0)           # core-split axis ("parallel")
        i = pl.program_id(1)           # reduction axis ("arbitrary")
        blk = c * steps_per_core + i   # logical row-block index
    else:
        i = pl.program_id(0)
        blk = i

    @pl.when(i == 0)
    def _():
        out_ref[...] = jnp.zeros_like(out_ref)

    n_chunks = row_tile // chunk

    def _chunk_sq(j):
        off = pl.multiple_of(j * chunk, chunk)
        x = o_ref[pl.ds(off, chunk), :].astype(jnp.float32)
        y = t_ref[pl.ds(off, chunk), :].astype(jnp.float32)
        d = x - y
        return off, d * d

    def unmasked_body(j, acc):
        _, sq = _chunk_sq(j)
        return acc + jnp.sum(sq.reshape(chunk // 8, 8, LANES), axis=0)

    def run_unmasked():
        acc = lax.fori_loop(0, n_chunks, unmasked_body,
                            jnp.zeros((8, LANES), jnp.float32), unroll=unroll)
        out_ref[...] += acc

    if needs_mask:
        # Hot path: blocks strictly before the boundary block need no mask.
        @pl.when(blk < edge_block)
        def _():
            run_unmasked()

        # Cold path: at most one real edge block (plus phantom tiles of an
        # uneven core split) — zero out rows past the logical end.
        @pl.when(blk >= edge_block)
        def _():
            def masked_body(j, acc):
                off, sq = _chunk_sq(j)
                local_row = lax.broadcasted_iota(jnp.int32, (chunk, LANES), 0)
                global_row = blk * row_tile + off + local_row
                sq = jnp.where(global_row < rows, sq, 0.0)
                return acc + jnp.sum(sq.reshape(chunk // 8, 8, LANES), axis=0)

            acc = lax.fori_loop(0, n_chunks, masked_body,
                                jnp.zeros((8, LANES), jnp.float32), unroll=unroll)
            out_ref[...] += acc
    else:
        run_unmasked()


def mse_loss(output, target, *, min_pallas_elements=MIN_PALLAS_ELEMENTS):
    assert output.shape == target.shape, "output/target shapes must match"
    total_n = output.size

    if not jnp.issubdtype(output.dtype, jnp.floating):
        output = output.astype(jnp.float32)
    if not jnp.issubdtype(target.dtype, jnp.floating):
        target = target.astype(jnp.float32)

    o_item = jnp.dtype(output.dtype).itemsize
    t_item = jnp.dtype(target.dtype).itemsize
    min_sub = max(8, 32 // min(o_item, t_item))   # sublane multiple: 8 f32, 16 bf16

    main_len = (total_n // LANES) * LANES
    rows = main_len // LANES

    # Small-input fallback: a pallas_call launch costs more than the reduction.
    if total_n < min_pallas_elements or rows < min_sub:
        d = output.astype(jnp.float32) - target.astype(jnp.float32)
        return jnp.mean(d * d)

    # Keep native dtype on the wire (bf16 reads half the HBM bytes). Only the
    # lane-aligned prefix goes through the kernel; the <128-element tail is
    # folded in below on the wrapper side — no full-array pad/copy.
    flat_o = output.reshape(-1)
    flat_t = target.reshape(-1)
    o2d = flat_o[:main_len].reshape(rows, LANES)
    t2d = flat_t[:main_len].reshape(rows, LANES)

    # Largest aligned row tile not exceeding the array.
    row_tile = min(MAX_ROW_TILE, (rows // min_sub) * min_sub)

    # Inner-loop chunk: largest multiple of min_sub <= MAX_CHUNK dividing row_tile.
    chunk = min(MAX_CHUNK, row_tile)
    while row_tile % chunk:
        chunk -= min_sub
    unroll = (row_tile // chunk) <= 32

    num_cores = _num_tensorcores()
    steps = pl.cdiv(rows, row_tile)
    steps_per_core = pl.cdiv(steps, num_cores) if num_cores > 1 else steps
    needs_mask = (num_cores * steps_per_core * row_tile) != rows
    edge_block = rows // row_tile    # first block index containing masked rows

    kernel = functools.partial(
        _mse_sum_kernel,
        row_tile=row_tile, chunk=chunk, rows=rows,
        steps_per_core=steps_per_core, num_cores=num_cores,
        edge_block=edge_block, needs_mask=needs_mask, unroll=unroll)

    if num_cores > 1:
        max_blk = steps - 1
        grid = (num_cores, steps_per_core)
        # Clamp so phantom tiles of an uneven core split re-read the last valid
        # block; their contribution is masked to zero in-kernel.
        in_map = lambda c, i: (jnp.minimum(c * steps_per_core + i, max_blk), 0)
        out_spec = pl.BlockSpec((8, LANES), lambda c, i: (c, 0))
        out_rows = num_cores * 8
        semantics = ("parallel", "arbitrary")
    else:
        grid = (steps,)
        in_map = lambda i: (i, 0)
        out_spec = pl.BlockSpec((8, LANES), lambda i: (0, 0))
        out_rows = 8
        semantics = ("arbitrary",)

    # Double-buffered input tiles + headroom; raises v5e's 16 MiB scoped default,
    # stays well under v7x's 64 MiB physical VMEM.
    tile_bytes = 2 * row_tile * LANES * (o_item + t_item)
    vmem_limit = int(min(max(tile_bytes + (8 << 20), 32 << 20), 48 << 20))

    cost = pl.CostEstimate(
        flops=3 * main_len,
        transcendentals=0,
        bytes_accessed=main_len * (o_item + t_item) + out_rows * LANES * 4)

    partials = pl.pallas_call(
        kernel,
        out_shape=jax.ShapeDtypeStruct((out_rows, LANES), jnp.float32),
        grid_spec=pltpu.PrefetchScalarGridSpec(
            num_scalar_prefetch=0,
            grid=grid,
            in_specs=[
                pl.BlockSpec((row_tile, LANES), in_map),
                pl.BlockSpec((row_tile, LANES), in_map),
            ],
            out_specs=out_spec,
        ),
        compiler_params=pltpu.CompilerParams(
            dimension_semantics=semantics,
            vmem_limit_bytes=vmem_limit),
        cost_estimate=cost,
    )(o2d, t2d)

    total = jnp.sum(partials, dtype=jnp.float32)

    tail = total_n - main_len
    if tail:
        to = flat_o[main_len:].astype(jnp.float32)
        tt = flat_t[main_len:].astype(jnp.float32)
        total = total + jnp.sum((to - tt) ** 2)

    return total / jnp.float32(total_n)


if __name__ == "__main__":
    key = jax.random.PRNGKey(0)
    k1, k2, k3, k4, k5, k6 = jax.random.split(key, 6)

    # Primary shape consistent with a typical forward: [B, C, H, W] = [2, 4, 16, 16]
    output = jax.random.normal(k1, (2, 4, 16, 16), dtype=jnp.float32)
    target = jax.random.normal(k2, (2, 4, 16, 16), dtype=jnp.float32)
    ref = jnp.mean((output - target) ** 2)

    # Force the Pallas path even at this small size so the kernel actually runs.
    loss = mse_loss(output, target, min_pallas_elements=0)
    jax.block_until_ready(loss)
    assert jnp.allclose(loss, ref, rtol=1e-5, atol=1e-6), (loss, ref)

    # Default path (small-input fallback) must agree too.
    loss_fb = mse_loss(output, target)
    assert jnp.allclose(loss_fb, ref, rtol=1e-5, atol=1e-6), (loss_fb, ref)

    # Ragged edge: row count not a multiple of the row tile (masked edge block).
    o2 = jax.random.normal(k3, (3, 5, 16, 16), dtype=jnp.float32)
    t2 = jax.random.normal(k4, (3, 5, 16, 16), dtype=jnp.float32)
    loss2 = mse_loss(o2, t2, min_pallas_elements=0)
    ref2 = jnp.mean((o2 - t2) ** 2)
    assert jnp.allclose(loss2, ref2, rtol=1e-5, atol=1e-6), (loss2, ref2)

    # Lane-unaligned element count: tail folded in on the wrapper side.
    o3 = jax.random.normal(k5, (5, 417), dtype=jnp.float32)   # 2085 elements
    t3 = jax.random.normal(k6, (5, 417), dtype=jnp.float32)
    loss3 = mse_loss(o3, t3, min_pallas_elements=0)
    ref3 = jnp.mean((o3 - t3) ** 2)
    assert jnp.allclose(loss3, ref3, rtol=1e-5, atol=1e-6), (loss3, ref3)

    # bf16 inputs stay bf16 in HBM; the kernel accumulates in f32.
    ob = output.astype(jnp.bfloat16)
    tb = target.astype(jnp.bfloat16)
    loss4 = mse_loss(ob, tb, min_pallas_elements=0)
    ref4 = jnp.mean((ob.astype(jnp.float32) - tb.astype(jnp.float32)) ** 2)
    assert jnp.allclose(loss4, ref4, rtol=1e-5, atol=1e-6), (loss4, ref4)

    jax.block_until_ready((loss, loss_fb, loss2, loss3, loss4))
    print("KERNEL_OK")
</pallas_src>

<mosaic_0001>
module attributes {stable_mosaic.version = 11 : i64} {
  func.func @_mse_sum_kernel(%arg0: i32, %arg1: memref<16x128xf32, #tpu.memory_space<vmem>>, %arg2: memref<16x128xf32, #tpu.memory_space<vmem>>, %arg3: memref<8x128xf32, #tpu.memory_space<vmem>>) attributes {dimension_semantics = [#tpu.dimension_semantics<arbitrary>], iteration_bounds = array<i64: 1>, scalar_prefetch = 0 : i64, scratch_operands = 0 : i64, tpu.core_type = #tpu.core_type<tc>, window_params = [{transform_indices = @transform_0, window_bounds = array<i64: 16, 128>}, {transform_indices = @transform_1, window_bounds = array<i64: 16, 128>}, {pipeline_mode = #tpu.pipeline_mode<synchronous>, transform_indices = @transform_2, window_bounds = array<i64: 8, 128>}]} {
    %c0_i32 = arith.constant 0 : i32
    %0 = arith.cmpi eq, %arg0, %c0_i32 : i32
    %1 = arith.extui %0 : i1 to i32
    %c0_i32_0 = arith.constant 0 : i32
    %2 = arith.cmpi ne, %1, %c0_i32_0 : i32
    scf.if %2 {
      %cst_8 = arith.constant 0.000000e+00 : f32
      %18 = vector.broadcast %cst_8 : f32 to vector<8x128xf32>
      %c0_9 = arith.constant 0 : index
      %c0_10 = arith.constant 0 : index
      %19 = vector.load %arg3[%c0_9, %c0_10] : memref<8x128xf32, #tpu.memory_space<vmem>>, vector<8x128xf32>
      tpu.vector_store %arg3[%c0_9, %c0_10], %18 {strides = array<i32>} : memref<8x128xf32, #tpu.memory_space<vmem>>, vector<8x128xf32>,
    } else {
    }
    %cst = arith.constant 0.000000e+00 : f32
    %3 = vector.broadcast %cst : f32 to vector<8x128xf32>
    %c0_i32_1 = arith.constant 0 : i32
    %c16_i32 = arith.constant 16 : i32
    %4 = arith.muli %c0_i32_1, %c16_i32 : i32
    %5 = tpu.assume_multiple %4, 16 : i32
    %6 = arith.index_cast %5 : i32 to index
    %c0 = arith.constant 0 : index
    %7 = vector.load %arg1[%6, %c0] : memref<16x128xf32, #tpu.memory_space<vmem>>, vector<16x128xf32>
    %8 = arith.index_cast %5 : i32 to index
    %c0_2 = arith.constant 0 : index
    %9 = vector.load %arg2[%8, %c0_2] : memref<16x128xf32, #tpu.memory_space<vmem>>, vector<16x128xf32>
    %10 = arith.subf %7, %9 : vector<16x128xf32>
    %11 = arith.mulf %10, %10 : vector<16x128xf32>
    %12 = vector.shape_cast %11 : vector<16x128xf32> to vector<2x8x128xf32>
    %cst_3 = arith.constant dense<0.000000e+00> : vector<8x128xf32>
    %13 = vector.multi_reduction <add>, %12, %cst_3 [0] : vector<2x8x128xf32> to vector<8x128xf32>
    %14 = arith.addf %3, %13 : vector<8x128xf32>
    %c1_i32 = arith.constant 1 : i32
    %c0_4 = arith.constant 0 : index
    %c0_5 = arith.constant 0 : index
    %15 = vector.load %arg3[%c0_4, %c0_5] : memref<8x128xf32, #tpu.memory_space<vmem>>, vector<8x128xf32>
    %16 = arith.addf %15, %14 : vector<8x128xf32>
    %c0_6 = arith.constant 0 : index
    %c0_7 = arith.constant 0 : index
    %17 = vector.load %arg3[%c0_6, %c0_7] : memref<8x128xf32, #tpu.memory_space<vmem>>, vector<8x128xf32>
    tpu.vector_store %arg3[%c0_6, %c0_7], %16 {strides = array<i32>} : memref<8x128xf32, #tpu.memory_space<vmem>>, vector<8x128xf32>,
    return
  }
  func.func @transform_0(%arg0: i32) -> (i32, i32) {
    %c0_i32 = arith.constant 0 : i32
    %c0_i32_0 = arith.constant 0 : i32
    return %arg0, %c0_i32 : i32, i32
  }
  func.func @transform_1(%arg0: i32) -> (i32, i32) {
    %c0_i32 = arith.constant 0 : i32
    %c0_i32_0 = arith.constant 0 : i32
    return %arg0, %c0_i32 : i32, i32
  }
  func.func @transform_2(%arg0: i32) -> (i32, i32) {
    %c0_i32 = arith.constant 0 : i32
    %c0_i32_0 = arith.constant 0 : i32
    %c0_i32_1 = arith.constant 0 : i32
    return %c0_i32, %c0_i32_0 : i32, i32
  }
}

</mosaic_0001>

<llo_original>
// kernel: tpu_custom_call.1
$region0: #{tpu_custom_call.1}
  #allocation0 [shape = 'u32[]', space=smem, size = 0x4, offset = 0x4, fixed_abs, tag = 'smem constant byte address 0x4 - core index']
  #allocation1 [shape = 'u32[144,128]{1,0:T(1,128)}', space=vmem, size = 0x12000, scoped, tag = 'internal scratch']
  %s0 = inlined_call_operand.hbm [shape: f32[16,128], index: 0, kind: input, shape index: {}]
  %s1 = inlined_call_operand.hbm [shape: f32[16,128], index: 1, kind: input, shape index: {}]
  %s2 = inlined_call_operand.hbm [shape: f32[8,128], index: 2, kind: output, shape index: {}]
  %s3 = sld [smem:[#allocation0]]
  $region30: #{tpu_custom_call.1} parent=0
    _
  %s5 = ssub.s32 1, %s3
  %s6 = scalar_select 0, %s5, %s3
  $region1: #{tpu_custom_call.1} parent=0
    #allocation2 [shape = 'u8[8192]{0}', space=vmem, size = 0x2000, scoped, tag = 'input window, operand 0, single buffered']
    #allocation3 [shape = 's32[1]{0}', space=sflag, size = 0x4, scoped, tag = 'scoped memory for tpu_custom_call.1']
    #allocation4 [shape = 's32[1]{0}', space=sflag, size = 0x4, scoped, tag = 'scoped memory for tpu_custom_call.1']
    #allocation5 [shape = 'u8[8192]{0}', space=vmem, size = 0x2000, scoped, tag = 'input window, operand 1, single buffered']
    #allocation6 [shape = 's32[1]{0}', space=sflag, size = 0x4, scoped, tag = 'scoped memory for tpu_custom_call.1']
    #allocation7 [shape = 'u8[4096]{0}', space=vmem, size = 0x1000, scoped, tag = 'output window, operand 0, single buffered']
    %7 = vsyncpa [#allocation3], 0
    %8 = vsyncpa [#allocation6], 0
    %9 = vsyncpa [#allocation4], 0
    // Predicated region
    $region2: #{tpu_custom_call.1} parent=1 // pred_check
      _
    $region3: #{tpu_custom_call.1} parent=1 // pred_check_branch
      %11 = sbr.rel (0) target = $region5
    $region4: #{tpu_custom_call.1} parent=1 // pred_region
      %s13 = ssub.s32 256, 256
      %14 = vsyncadd [#allocation3], %s13
      %s15 = sshll.u32 [#allocation2], 4
      %s16 = int_to_ptr.vmem [resolvable:$true] %s15
      %21 = dma.hbm_to_vmem [thread:$0]  %s0, 256, %s16, [#allocation3], 128, 128, 8
    $region5: #{tpu_custom_call.1} parent=1 // pred_fallthru
      _
    // Predicated region
    $region6: #{tpu_custom_call.1} parent=1 // pred_check
      _
    $region7: #{tpu_custom_call.1} parent=1 // pred_check_branch
      %23 = sbr.rel (0) target = $region9
    $region8: #{tpu_custom_call.1} parent=1 // pred_region
      %s25 = ssub.s32 256, 256
      %26 = vsyncadd [#allocation6], %s25
      %s27 = sshll.u32 [#allocation5], 4
      %s28 = int_to_ptr.vmem [resolvable:$true] %s27
      %33 = dma.hbm_to_vmem [thread:$0]  %s1, 256, %s28, [#allocation6], 128, 128, 8
    $region9: #{tpu_custom_call.1} parent=1 // pred_fallthru
      _
    // Predicated region
    $region10: #{tpu_custom_call.1} parent=1 // pred_check
      _
    $region11: #{tpu_custom_call.1} parent=1 // pred_check_branch
      %35 = sbr.rel (0) target = $region13
    $region12: #{tpu_custom_call.1} parent=1 // pred_region
      %36 = dma.done [#allocation3], 256
    $region13: #{tpu_custom_call.1} parent=1 // pred_fallthru
      _
    // Predicated region
    $region14: #{tpu_custom_call.1} parent=1 // pred_check
      _
    $region15: #{tpu_custom_call.1} parent=1 // pred_check_branch
      %38 = sbr.rel (0) target = $region17
    $region16: #{tpu_custom_call.1} parent=1 // pred_region
      %39 = dma.done [#allocation6], 256
    $region17: #{tpu_custom_call.1} parent=1 // pred_fallthru
      _
    %p40 = scmp.eq.s32.totalorder 0, 0
    // Predicated region
    $region18: #{tpu_custom_call.1} parent=1 // pred_check
      %p41 = pneg %p40
    $region19: #{tpu_custom_call.1} parent=1 // pred_check_branch
      %43 = sbr.rel (%p41) target = $region21
    $region20: #{tpu_custom_call.1} parent=1 // pred_region
      %44 = vst [vmem:[#allocation7] sm:$0xff] 0.0
    $region21: #{tpu_custom_call.1} parent=1 // pred_fallthru
      _
    %v45 = vld [vmem:[#allocation2] sm:$0xff]
    %v46 = vld [vmem:[#allocation2 + $0x8] sm:$0xff]
    %v47 = vld [vmem:[#allocation5] sm:$0xff]
    %v48 = vld [vmem:[#allocation5 + $0x8] sm:$0xff]
    %v49 = vsub.f32 %v45, %v47
    %v50 = vsub.f32 %v46, %v48
    %v51 = vmul.f32 %v49, %v49
    %v52 = vmul.f32 %v50, %v50
    %v53 = vadd.f32 %v51, %v52
    %v54 = vadd.f32 %v53, 0.0
    %v55 = vld [vmem:[#allocation7] sm:$0xff]
    %v56 = vadd.f32 %v55, %v54
    %57 = vst [vmem:[#allocation7] sm:$0xff] %v56
    // Predicated region
    $region22: #{tpu_custom_call.1} parent=1 // pred_check
      _
    $region23: #{tpu_custom_call.1} parent=1 // pred_check_branch
      %59 = sbr.rel (0) target = $region25
    $region24: #{tpu_custom_call.1} parent=1 // pred_region
      %s61 = ssub.s32 128, 128
      %62 = vsyncadd [#allocation4], %s61
      %s64 = sshll.u32 [#allocation7], 4
      %s65 = int_to_ptr.vmem [resolvable:$true] %s64
      %67 = dma.vmem_to_hbm [thread:$0]  %s65, 128, %s2, [#allocation4]
    $region25: #{tpu_custom_call.1} parent=1 // pred_fallthru
      _
    // Predicated region
    $region26: #{tpu_custom_call.1} parent=1 // pred_check
      _
    $region27: #{tpu_custom_call.1} parent=1 // pred_check_branch
      %69 = sbr.rel (0) target = $region29
    $region28: #{tpu_custom_call.1} parent=1 // pred_region
      %70 = dma.done [#allocation4], 128
    $region29: #{tpu_custom_call.1} parent=1 // pred_fallthru
      _
    %71 = vsyncpa [#allocation3], 1
    %72 = vsyncpa [#allocation6], 1
    %73 = vsyncpa [#allocation4], 1

</llo_original>
